<compile_context>
chip_gen: v7x
topology: tpu7x:2x2x1
jax: 0.10.0
libtpu: 0.0.40
codegen_flags: <defaults>
</compile_context>

<pallas_src>
import functools

import numpy as np
import jax
import jax.numpy as jnp
from jax.experimental import pallas as pl
from jax.experimental.pallas import tpu as pltpu

# ---- SRVFC(large=False) deterministic parameters (from __init__) ----
DIS_RATIO = 3.0
SAMPLE_INTERVAL = 4
W0 = -0.5      # output_proj.weight[0, 0]
W1 = 0.5       # output_proj.weight[0, 1]
BIAS = 0.0     # output_proj.bias


def _round_up(x, m):
    return ((x + m - 1) // m) * m


def _srvfc_kernel(c_ref, v_ref, dcr_ref, mask_ref, o_ref):
    cxy = c_ref[...]                 # [BT, MP, 2]
    cx = cxy[:, :, 0:1]              # [BT, MP, 1]   (contour on sublanes)
    cy = cxy[:, :, 1:2]
    v = v_ref[...]                   # [BT, 2, NP]
    vx = v[:, 0:1, :]                # [BT, 1, NP]   (vertices on lanes)
    vy = v[:, 1:2, :]

    # Pairwise squared distances directly on the VPU (exact, >= 0 -> no clamp).
    dx = cx - vx                     # [BT, MP, NP]
    dy = cy - vy
    d2 = dx * dx + dy * dy

    min_d2 = jnp.min(d2, axis=1, keepdims=True)               # [BT, 1, NP]

    # First-occurrence argmin over the contour axis (matches np.argmin
    # tie-breaking; padded duplicate contour rows can never win a tie).
    mp = d2.shape[1]
    row_ids = jax.lax.broadcasted_iota(jnp.int32, d2.shape, 1)
    cand = jnp.where(d2 <= min_d2, row_ids, jnp.int32(mp))
    arg = jnp.min(cand, axis=1, keepdims=True)                 # [BT, 1, NP]

    # Gather dcr at the matched contour index: VPU select + sublane reduce
    # (no one-hot materialization, no MXU round trip).
    dcr_col = dcr_ref[...]                                     # [BT, MP, 1]
    dcr_match = jnp.sum(jnp.where(row_ids == arg, dcr_col, 0.0),
                        axis=1, keepdims=True)                 # [BT, 1, NP]

    # Folded epilogue: reference zeroes features of padded vertices, then
    # applies the (zero-bias) linear projection to every vertex.
    feat = (W0 / DIS_RATIO) * jnp.sqrt(min_d2) + W1 * dcr_match
    out = feat * mask_ref[...]                                 # [BT, 1, NP]
    if BIAS != 0.0:   # trace-time constant; skipped for the reference weights
        out = out + BIAS
    o_ref[...] = out


def direction_change_rate_all(contour):
    """Reference `direction_change_rate` evaluated at every contour point
    (the kernel gathers the matched index).  |atan2(cross, dot)| equals the
    wrapped |angle2 - angle1| of the reference.  contour: [M, 2]."""
    def cal(k):
        pf = jnp.roll(contour, k, axis=0)      # contour[(m - k) % M]
        pb = jnp.roll(contour, -k, axis=0)     # contour[(m + k) % M]
        v1 = contour - pf
        v2 = pb - contour
        cross = v1[:, 0] * v2[:, 1] - v1[:, 1] * v2[:, 0]
        dot = v1[:, 0] * v2[:, 0] + v1[:, 1] * v2[:, 1]
        return jnp.abs(jnp.arctan2(cross, dot))
    return (cal(1) + cal(3)) * 0.5             # [M]


def _default_b_tile(B, MP, NP):
    """Fold the batch when per-step work is tiny; otherwise keep >= 2 grid
    steps (megacore on dual-TC chips + DMA/compute overlap) and cap the
    resident VMEM of the ~8 live [MP, NP] f32 intermediates per batch."""
    per_b_bytes = 8 * MP * NP * 4
    bt = B
    if B % 2 == 0 and MP * NP >= (1 << 16):
        bt = B // 2
    budget = 12 << 20                     # headroom inside default scoped VMEM
    while bt > 1 and bt * per_b_bytes > budget:
        bt -= 1
    while B % bt:
        bt -= 1
    return max(bt, 1)


@functools.partial(jax.jit, static_argnames=("b_tile",))
def srvfc_forward(contours, vertices, valid_mask, *, b_tile=None):
    """
    contours:   [B, M, 2] pre-extracted, pre-subsampled contour points.
    vertices:   [B, N, 2] vertex coordinates.
    valid_mask: [B, N]    1 = valid, 0 = padding.
    returns:    [B, N]    per-vertex logits (== SRVFC.forward output).
    """
    # TODO(synk): cv2.findContours + max-area contour selection + the
    # `contour[0::sample_interval]` slicing are host-side / ragged in the
    # reference; the kernel consumes an already-extracted contour.
    B, M, _ = contours.shape
    _, N, _ = vertices.shape

    MP = _round_up(M, 8)      # contour axis (sublane axis of d2)
    NP = _round_up(N, 128)    # vertex axis  (lane axis) -> lane-dense stores

    contours = contours.astype(jnp.float32)
    dcr = jax.vmap(direction_change_rate_all)(contours)            # [B, M]

    # Pad contour rows by repeating the first point: duplicates never win the
    # first-occurrence argmin tie-break, so the result is unchanged.
    if MP > M:
        pad_c = jnp.broadcast_to(contours[:, :1, :], (B, MP - M, 2))
        contours = jnp.concatenate([contours, pad_c], axis=1)
        dcr = jnp.pad(dcr, ((0, 0), (0, MP - M)))
    dcr_col = dcr[:, :, None]                                       # [B, MP, 1]

    verts = vertices.astype(jnp.float32)
    mask = valid_mask.astype(jnp.float32)
    if NP > N:
        verts = jnp.pad(verts, ((0, 0), (0, NP - N), (0, 0)))
        mask = jnp.pad(mask, ((0, 0), (0, NP - N)))
    vT = jnp.transpose(verts, (0, 2, 1))                            # [B, 2, NP]
    mask3 = mask[:, None, :]                                        # [B, 1, NP]

    if b_tile is None:
        b_tile = _default_b_tile(B, MP, NP)
    assert B % b_tile == 0

    out = pl.pallas_call(
        _srvfc_kernel,
        out_shape=jax.ShapeDtypeStruct((B, 1, NP), jnp.float32),
        grid_spec=pltpu.PrefetchScalarGridSpec(
            num_scalar_prefetch=0,
            grid=(B // b_tile,),
            in_specs=[
                pl.BlockSpec((b_tile, MP, 2), lambda i: (i, 0, 0)),
                pl.BlockSpec((b_tile, 2, NP), lambda i: (i, 0, 0)),
                pl.BlockSpec((b_tile, MP, 1), lambda i: (i, 0, 0)),
                pl.BlockSpec((b_tile, 1, NP), lambda i: (i, 0, 0)),
            ],
            out_specs=pl.BlockSpec((b_tile, 1, NP), lambda i: (i, 0, 0)),
        ),
        compiler_params=pltpu.CompilerParams(
            dimension_semantics=("parallel",)),
    )(contours, vT, dcr_col, mask3)
    # NOTE: padded vertex columns (n >= N) are masked to 0 (mask pad is 0) and
    # sliced off here — callers must never consume out[..., N:].
    return out[:, 0, :N]


def srvfc_reference(contours, vertices, valid_mask):
    """Pure-jnp reference of the kernel-side math (direct (c-v)^2 form)."""
    contours = contours.astype(jnp.float32)
    vertices = vertices.astype(jnp.float32)
    dcr = jax.vmap(direction_change_rate_all)(contours)             # [B, M]
    diff = contours[:, :, None, :] - vertices[:, None, :, :]        # [B,M,N,2]
    dist = jnp.sqrt(jnp.sum(diff * diff, axis=-1))                  # [B, M, N]
    arg = jnp.argmin(dist, axis=1)                                  # [B, N]
    vc_dis = jnp.min(dist, axis=1) / DIS_RATIO                      # [B, N]
    dcr_match = jnp.take_along_axis(dcr, arg, axis=1)               # [B, N]
    m = valid_mask.astype(jnp.float32)
    return W0 * (vc_dis * m) + W1 * (dcr_match * m) + BIAS


if __name__ == "__main__":
    key = jax.random.PRNGKey(0)
    B, N, W = 2, 8, 64
    M_FULL = 64

    # Synthetic "segmentation contours": pixel-quantized circles per batch,
    # then sub-sampled by SAMPLE_INTERVAL (as in vertex_connect).
    theta = np.linspace(0.0, 2.0 * np.pi, M_FULL, endpoint=False)
    conts = []
    for b in range(B):
        r = 18.0 + 6.0 * b
        cx0, cy0 = 32.0, 32.0
        pts = np.stack([cx0 + r * np.cos(theta), cy0 + r * np.sin(theta)], axis=-1)
        conts.append(np.floor(pts))
    contours = np.stack(conts, axis=0)[:, ::SAMPLE_INTERVAL, :]      # [B, 16, 2]
    contours = jnp.asarray(contours, dtype=jnp.float32)              # M = 16

    k1, _ = jax.random.split(key)
    vertices = jax.random.uniform(k1, (B, N, 2), minval=0.0, maxval=float(W))
    valid_mask = jnp.ones((B, N), jnp.float32).at[1, 5:].set(0.0)

    out = srvfc_forward(contours, vertices, valid_mask)
    jax.block_until_ready(out)
    assert out.shape == (B, N)

    ref = srvfc_reference(contours, vertices, valid_mask)
    np.testing.assert_allclose(np.asarray(out), np.asarray(ref),
                               rtol=1e-2, atol=2e-2)
    print("KERNEL_OK")
</pallas_src>

<mosaic_0001>
module attributes {stable_mosaic.version = 11 : i64} {
  func.func @_srvfc_kernel(%arg0: i32, %arg1: memref<2x16x2xf32, #tpu.memory_space<vmem>>, %arg2: memref<2x2x128xf32, #tpu.memory_space<vmem>>, %arg3: memref<2x16x1xf32, #tpu.memory_space<vmem>>, %arg4: memref<2x1x128xf32, #tpu.memory_space<vmem>>, %arg5: memref<2x1x128xf32, #tpu.memory_space<vmem>>) attributes {dimension_semantics = [#tpu.dimension_semantics<parallel>], iteration_bounds = array<i64: 1>, scalar_prefetch = 0 : i64, scratch_operands = 0 : i64, tpu.core_type = #tpu.core_type<tc>, window_params = [{transform_indices = @transform_0, window_bounds = array<i64: 2, 16, 2>}, {transform_indices = @transform_1, window_bounds = array<i64: 2, 2, 128>}, {transform_indices = @transform_2, window_bounds = array<i64: 2, 16, 1>}, {transform_indices = @transform_3, window_bounds = array<i64: 2, 1, 128>}, {transform_indices = @transform_4, window_bounds = array<i64: 2, 1, 128>}]} {
    %c0 = arith.constant 0 : index
    %c0_0 = arith.constant 0 : index
    %c0_1 = arith.constant 0 : index
    %0 = vector.load %arg1[%c0, %c0_0, %c0_1] : memref<2x16x2xf32, #tpu.memory_space<vmem>>, vector<2x16x2xf32>
    %1 = vector.extract_strided_slice %0 {offsets = [0, 0, 0], sizes = [2, 16, 1], strides = [1, 1, 1]} : vector<2x16x2xf32> to vector<2x16x1xf32>
    %2 = vector.extract_strided_slice %0 {offsets = [0, 0, 1], sizes = [2, 16, 1], strides = [1, 1, 1]} : vector<2x16x2xf32> to vector<2x16x1xf32>
    %c0_2 = arith.constant 0 : index
    %c0_3 = arith.constant 0 : index
    %c0_4 = arith.constant 0 : index
    %3 = vector.load %arg2[%c0_2, %c0_3, %c0_4] : memref<2x2x128xf32, #tpu.memory_space<vmem>>, vector<2x2x128xf32>
    %4 = vector.extract_strided_slice %3 {offsets = [0, 0, 0], sizes = [2, 1, 128], strides = [1, 1, 1]} : vector<2x2x128xf32> to vector<2x1x128xf32>
    %5 = vector.extract_strided_slice %3 {offsets = [0, 1, 0], sizes = [2, 1, 128], strides = [1, 1, 1]} : vector<2x2x128xf32> to vector<2x1x128xf32>
    %6 = vector.broadcast %1 : vector<2x16x1xf32> to vector<2x16x128xf32>
    %7 = vector.broadcast %4 : vector<2x1x128xf32> to vector<2x16x128xf32>
    %8 = arith.subf %6, %7 : vector<2x16x128xf32>
    %9 = vector.broadcast %2 : vector<2x16x1xf32> to vector<2x16x128xf32>
    %10 = vector.broadcast %5 : vector<2x1x128xf32> to vector<2x16x128xf32>
    %11 = arith.subf %9, %10 : vector<2x16x128xf32>
    %12 = arith.mulf %8, %8 : vector<2x16x128xf32>
    %13 = arith.mulf %11, %11 : vector<2x16x128xf32>
    %14 = arith.addf %12, %13 : vector<2x16x128xf32>
    %cst = arith.constant dense<0x7F800000> : vector<2x128xf32>
    %15 = vector.multi_reduction <minimumf>, %14, %cst [1] : vector<2x16x128xf32> to vector<2x128xf32>
    %16 = vector.shape_cast %15 : vector<2x128xf32> to vector<2x1x128xf32>
    %17 = tpu.iota {dimensions = array<i32: 1>} : vector<2x16x128xi32>
    %18 = vector.broadcast %16 : vector<2x1x128xf32> to vector<2x16x128xf32>
    %19 = arith.cmpf ole, %14, %18 : vector<2x16x128xf32>
    %c16_i32 = arith.constant 16 : i32
    %20 = vector.broadcast %c16_i32 : i32 to vector<2x16x128xi32>
    %21 = arith.select %19, %17, %20 : vector<2x16x128xi1>, vector<2x16x128xi32>
    %cst_5 = arith.constant dense<2147483647> : vector<2x128xi32>
    %22 = vector.multi_reduction <minsi>, %21, %cst_5 [1] : vector<2x16x128xi32> to vector<2x128xi32>
    %23 = vector.shape_cast %22 : vector<2x128xi32> to vector<2x1x128xi32>
    %c0_6 = arith.constant 0 : index
    %c0_7 = arith.constant 0 : index
    %c0_8 = arith.constant 0 : index
    %24 = vector.load %arg3[%c0_6, %c0_7, %c0_8] : memref<2x16x1xf32, #tpu.memory_space<vmem>>, vector<2x16x1xf32>
    %25 = vector.broadcast %23 : vector<2x1x128xi32> to vector<2x16x128xi32>
    %26 = arith.cmpi eq, %17, %25 : vector<2x16x128xi32>
    %cst_9 = arith.constant 0.000000e+00 : f32
    %27 = vector.shape_cast %24 : vector<2x16x1xf32> to vector<2x16x1xf32>
    %28 = vector.broadcast %27 : vector<2x16x1xf32> to vector<2x16x128xf32>
    %29 = vector.broadcast %cst_9 : f32 to vector<2x16x128xf32>
    %30 = arith.select %26, %28, %29 : vector<2x16x128xi1>, vector<2x16x128xf32>
    %cst_10 = arith.constant dense<0.000000e+00> : vector<2x128xf32>
    %31 = vector.multi_reduction <add>, %30, %cst_10 [1] : vector<2x16x128xf32> to vector<2x128xf32>
    %32 = vector.shape_cast %31 : vector<2x128xf32> to vector<2x1x128xf32>
    %33 = math.sqrt %16 : vector<2x1x128xf32>
    %cst_11 = arith.constant -0.166666672 : f32
    %34 = vector.broadcast %cst_11 : f32 to vector<2x1x128xf32>
    %35 = arith.mulf %34, %33 : vector<2x1x128xf32>
    %cst_12 = arith.constant 5.000000e-01 : f32
    %36 = vector.broadcast %cst_12 : f32 to vector<2x1x128xf32>
    %37 = arith.mulf %36, %32 : vector<2x1x128xf32>
    %38 = arith.addf %35, %37 : vector<2x1x128xf32>
    %c0_13 = arith.constant 0 : index
    %c0_14 = arith.constant 0 : index
    %c0_15 = arith.constant 0 : index
    %39 = vector.load %arg4[%c0_13, %c0_14, %c0_15] : memref<2x1x128xf32, #tpu.memory_space<vmem>>, vector<2x1x128xf32>
    %40 = arith.mulf %38, %39 : vector<2x1x128xf32>
    %c0_16 = arith.constant 0 : index
    %c0_17 = arith.constant 0 : index
    %c0_18 = arith.constant 0 : index
    %41 = vector.load %arg5[%c0_16, %c0_17, %c0_18] : memref<2x1x128xf32, #tpu.memory_space<vmem>>, vector<2x1x128xf32>
    tpu.vector_store %arg5[%c0_16, %c0_17, %c0_18], %40 {strides = array<i32>} : memref<2x1x128xf32, #tpu.memory_space<vmem>>, vector<2x1x128xf32>,
    return
  }
  func.func @transform_0(%arg0: i32) -> (i32, i32, i32) {
    %c0_i32 = arith.constant 0 : i32
    %c0_i32_0 = arith.constant 0 : i32
    %c0_i32_1 = arith.constant 0 : i32
    return %arg0, %c0_i32, %c0_i32_0 : i32, i32, i32
  }
  func.func @transform_1(%arg0: i32) -> (i32, i32, i32) {
    %c0_i32 = arith.constant 0 : i32
    %c0_i32_0 = arith.constant 0 : i32
    %c0_i32_1 = arith.constant 0 : i32
    return %arg0, %c0_i32, %c0_i32_0 : i32, i32, i32
  }
  func.func @transform_2(%arg0: i32) -> (i32, i32, i32) {
    %c0_i32 = arith.constant 0 : i32
    %c0_i32_0 = arith.constant 0 : i32
    %c0_i32_1 = arith.constant 0 : i32
    return %arg0, %c0_i32, %c0_i32_0 : i32, i32, i32
  }
  func.func @transform_3(%arg0: i32) -> (i32, i32, i32) {
    %c0_i32 = arith.constant 0 : i32
    %c0_i32_0 = arith.constant 0 : i32
    %c0_i32_1 = arith.constant 0 : i32
    return %arg0, %c0_i32, %c0_i32_0 : i32, i32, i32
  }
  func.func @transform_4(%arg0: i32) -> (i32, i32, i32) {
    %c0_i32 = arith.constant 0 : i32
    %c0_i32_0 = arith.constant 0 : i32
    %c0_i32_1 = arith.constant 0 : i32
    return %arg0, %c0_i32, %c0_i32_0 : i32, i32, i32
  }
}

</mosaic_0001>

<llo_original>
// kernel: srvfc_forward.1
$region0: #{srvfc_forward.1}
  #allocation0 [shape = 'u32[]', space=smem, size = 0x4, offset = 0x4, fixed_abs, tag = 'smem constant byte address 0x4 - core index']
  #allocation1 [shape = 'u32[144,128]{1,0:T(1,128)}', space=vmem, size = 0x12000, scoped, tag = 'internal scratch']
  %s0 = inlined_call_operand.vmem [shape: f32[2,16,2], index: 0, kind: input, shape index: {}]
  %s1 = inlined_call_operand.vmem [shape: f32[2,2,128], index: 1, kind: input, shape index: {}]
  %s2 = inlined_call_operand.vmem [shape: f32[2,16,1], index: 2, kind: input, shape index: {}]
  %s3 = inlined_call_operand.vmem [shape: f32[2,1,128], index: 3, kind: input, shape index: {}]
  %s4 = inlined_call_operand.hbm [shape: f32[2,1,128], index: 4, kind: output, shape index: {}]
  %s5 = sld [smem:[#allocation0]]
  $region26: #{srvfc_forward.1} parent=0
    _
  %s7 = ssub.s32 1, %s5
  %s8 = scalar_select 0, %s7, %s5
  $region1: #{srvfc_forward.1} parent=0
    #allocation2 [shape = 'u8[1024]{0}', space=vmem, size = 0x400, scoped, tag = 'output window, operand 0, single buffered']
    #allocation3 [shape = 's32[1]{0}', space=sflag, size = 0x4, scoped, tag = 'scoped memory for srvfc_forward.1']
    %9 = vsyncpa [#allocation3], 0
    // Predicated region
    $region2: #{srvfc_forward.1} parent=1 // pred_check
      _
    $region3: #{srvfc_forward.1} parent=1 // pred_check_branch
      %11 = sbr.rel (0) target = $region5
    $region4: #{srvfc_forward.1} parent=1 // pred_region
      _
    $region5: #{srvfc_forward.1} parent=1 // pred_fallthru
      _
    // Predicated region
    $region6: #{srvfc_forward.1} parent=1 // pred_check
      _
    $region7: #{srvfc_forward.1} parent=1 // pred_check_branch
      %13 = sbr.rel (0) target = $region9
    $region8: #{srvfc_forward.1} parent=1 // pred_region
      _
    $region9: #{srvfc_forward.1} parent=1 // pred_fallthru
      _
    // Predicated region
    $region10: #{srvfc_forward.1} parent=1 // pred_check
      _
    $region11: #{srvfc_forward.1} parent=1 // pred_check_branch
      %15 = sbr.rel (0) target = $region13
    $region12: #{srvfc_forward.1} parent=1 // pred_region
      _
    $region13: #{srvfc_forward.1} parent=1 // pred_fallthru
      _
    // Predicated region
    $region14: #{srvfc_forward.1} parent=1 // pred_check
      _
    $region15: #{srvfc_forward.1} parent=1 // pred_check_branch
      %17 = sbr.rel (0) target = $region17
    $region16: #{srvfc_forward.1} parent=1 // pred_region
      _
    $region17: #{srvfc_forward.1} parent=1 // pred_fallthru
      _
    %v18 = vld [vmem:[%s0] sm:$0xff]
    %v19 = vld [vmem:[%s0 + $0x8] sm:$0xff]
    %v20 = vld [vmem:[%s0 + $0x10] sm:$0xff]
    %v21 = vld [vmem:[%s0 + $0x18] sm:$0xff]
    %v22 = vld [vmem:[%s1] sm:$0x3]
    %v23 = vld [vmem:[%s1 + $0x2] sm:$0x3]
    %25 = vset.pattern.permute.xlu0 0
    %26 = vperm.xlu0 %25, %v18
    %v27 = vpop.permute.xlu0 %26
    %30 = vset.pattern.permute.xlu0 0
    %31 = vperm.xlu0 %30, %v19
    %v32 = vpop.permute.xlu0 %31
    %35 = vset.pattern.permute.xlu0 0
    %36 = vperm.xlu0 %35, %v20
    %v37 = vpop.permute.xlu0 %36
    %40 = vset.pattern.permute.xlu0 0
    %41 = vperm.xlu0 %40, %v21
    %v42 = vpop.permute.xlu0 %41
    %v44 = vlaneseq
    %v45 = vshrl.u32 %v44, 7
    %v46 = vsub.s32 0, %v45
    %v47 = vrot.slane %v22, %v46
    %v48 = vlaneseq
    %v49 = vshrl.u32 %v48, 7
    %v50 = vsub.s32 0, %v49
    %v51 = vrot.slane %v23, %v50
    %v52 = vsub.f32 %v27, %v47
    %v53 = vsub.f32 %v32, %v47
    %v54 = vsub.f32 %v37, %v51
    %v55 = vsub.f32 %v42, %v51
    %56 = vset.pattern.permute.xlu0 1
    %57 = vperm.xlu0 %56, %v18
    %v58 = vpop.permute.xlu0 %57
    %60 = vset.pattern.permute.xlu0 1
    %61 = vperm.xlu0 %60, %v19
    %v62 = vpop.permute.xlu0 %61
    %64 = vset.pattern.permute.xlu0 1
    %65 = vperm.xlu0 %64, %v20
    %v66 = vpop.permute.xlu0 %65
    %68 = vset.pattern.permute.xlu0 1
    %69 = vperm.xlu0 %68, %v21
    %v70 = vpop.permute.xlu0 %69
    %v72 = vlaneseq
    %v73 = vshrl.u32 %v72, 7
    %v74 = vsub.s32 1, %v73
    %v75 = vrot.slane %v22, %v74
    %v76 = vlaneseq
    %v77 = vshrl.u32 %v76, 7
    %v78 = vsub.s32 1, %v77
    %v79 = vrot.slane %v23, %v78
    %v80 = vsub.f32 %v58, %v75
    %v81 = vsub.f32 %v62, %v75
    %v82 = vsub.f32 %v66, %v79
    %v83 = vsub.f32 %v70, %v79
    %v84 = vmul.f32 %v52, %v52
    %v85 = vmul.f32 %v53, %v53
    %v86 = vmul.f32 %v54, %v54
    %v87 = vmul.f32 %v55, %v55
    %v88 = vmul.f32 %v80, %v80
    %v89 = vmul.f32 %v81, %v81
    %v90 = vmul.f32 %v82, %v82
    %v91 = vmul.f32 %v83, %v83
    %v92 = vadd.f32 %v84, %v88
    %v93 = vadd.f32 %v85, %v89
    %v94 = vadd.f32 %v86, %v90
    %v95 = vadd.f32 %v87, %v91
    %v96 = vmin.f32 %v92, %v93
    %v97 = vrot.slane %v96, 4
    %v98 = vmin.f32 %v96, %v97
    %v99 = vrot.slane %v98, 2
    %v100 = vmin.f32 %v98, %v99
    %v101 = vrot.slane %v100, 1
    %v102 = vmin.f32 %v100, %v101
    %v103 = vmin.f32 %v94, %v95
    %v104 = vrot.slane %v103, 4
    %v105 = vmin.f32 %v103, %v104
    %v106 = vrot.slane %v105, 2
    %v107 = vmin.f32 %v105, %v106
    %v108 = vrot.slane %v107, 1
    %v109 = vmin.f32 %v107, %v108
    %v110 = vlaneseq
    %v111 = vshrl.u32 %v110, 7
    %v112 = vadd.s32 %v111, 8
    %vm113 = vcmp.le.f32.partialorder %v92, %v102
    %vm114 = vcmp.le.f32.partialorder %v93, %v102
    %vm115 = vcmp.le.f32.partialorder %v94, %v109
    %vm116 = vcmp.le.f32.partialorder %v95, %v109
    %v117 = vsel %vm113, %v111, 16
    %v118 = vsel %vm114, %v112, 16
    %v119 = vsel %vm115, %v111, 16
    %v120 = vsel %vm116, %v112, 16
    %vm121 = vcmp.lt.s32.totalorder %v117, %v118
    %v122 = vsel %vm121, %v117, %v118
    %v123 = vrot.slane %v122, 4
    %vm124 = vcmp.lt.s32.totalorder %v122, %v123
    %v125 = vsel %vm124, %v122, %v123
    %v126 = vrot.slane %v125, 2
    %vm127 = vcmp.lt.s32.totalorder %v125, %v126
    %v128 = vsel %vm127, %v125, %v126
    %v129 = vrot.slane %v128, 1
    %vm130 = vcmp.lt.s32.totalorder %v128, %v129
    %v131 = vsel %vm130, %v128, %v129
    %vm132 = vcmp.lt.s32.totalorder %v119, %v120
    %v133 = vsel %vm132, %v119, %v120
    %v134 = vrot.slane %v133, 4
    %vm135 = vcmp.lt.s32.totalorder %v133, %v134
    %v136 = vsel %vm135, %v133, %v134
    %v137 = vrot.slane %v136, 2
    %vm138 = vcmp.lt.s32.totalorder %v136, %v137
    %v139 = vsel %vm138, %v136, %v137
    %v140 = vrot.slane %v139, 1
    %vm141 = vcmp.lt.s32.totalorder %v139, %v140
    %v142 = vsel %vm141, %v139, %v140
    %v143 = vld [vmem:[%s2] sm:$0xff]
    %v144 = vld [vmem:[%s2 + $0x8] sm:$0xff]
    %v145 = vld [vmem:[%s2 + $0x10] sm:$0xff]
    %v146 = vld [vmem:[%s2 + $0x18] sm:$0xff]
    %vm147 = vcmp.eq.s32.totalorder %v111, %v131
    %vm148 = vcmp.eq.s32.totalorder %v112, %v131
    %vm149 = vcmp.eq.s32.totalorder %v111, %v142
    %vm150 = vcmp.eq.s32.totalorder %v112, %v142
    %152 = vset.pattern.permute.xlu0 0
    %153 = vperm.xlu0 %152, %v143
    %v154 = vpop.permute.xlu0 %153
    %157 = vset.pattern.permute.xlu0 0
    %158 = vperm.xlu0 %157, %v144
    %v159 = vpop.permute.xlu0 %158
    %162 = vset.pattern.permute.xlu0 0
    %163 = vperm.xlu0 %162, %v145
    %v164 = vpop.permute.xlu0 %163
    %167 = vset.pattern.permute.xlu0 0
    %168 = vperm.xlu0 %167, %v146
    %v169 = vpop.permute.xlu0 %168
    %v171 = vsel %vm147, %v154, 0.0
    %v172 = vsel %vm148, %v159, 0.0
    %v173 = vsel %vm149, %v164, 0.0
    %v174 = vsel %vm150, %v169, 0.0
    %v175 = vadd.f32 %v171, %v172
    %v176 = vrot.slane %v175, 4
    %v177 = vadd.f32 %v175, %v176
    %v178 = vrot.slane %v177, 2
    %v179 = vadd.f32 %v177, %v178
    %v180 = vrot.slane %v179, 1
    %v181 = vadd.f32 %v179, %v180
    %v182 = vadd.f32 %v173, %v174
    %v183 = vrot.slane %v182, 4
    %v184 = vadd.f32 %v182, %v183
    %v185 = vrot.slane %v184, 2
    %v186 = vadd.f32 %v184, %v185
    %v187 = vrot.slane %v186, 1
    %v188 = vadd.f32 %v186, %v187
    %v189 = vrsqrt.pop %v102
    %v190 = vmul.f32 %v102, %v189
    %vm191 = vcmp.eq.f32.partialorder %v102, inf
    %v192 = vsel %vm191, %v102, %v190
    %vm193 = vcmp.eq.f32.partialorder %v102, 0.0
    %v194 = vand.u32 %v102, 2147483648
    %v195 = vsel %vm193, %v194, %v192
    %v196 = vrsqrt.pop %v109
    %v197 = vmul.f32 %v109, %v196
    %vm198 = vcmp.eq.f32.partialorder %v109, inf
    %v199 = vsel %vm198, %v109, %v197
    %vm200 = vcmp.eq.f32.partialorder %v109, 0.0
    %v201 = vand.u32 %v109, 2147483648
    %v202 = vsel %vm200, %v201, %v199
    %v203 = vmul.f32 %v195, -0.16666667
    %v204 = vmul.f32 %v202, -0.16666667
    %v205 = vmul.f32 %v181, 0.5
    %v206 = vmul.f32 %v188, 0.5
    %v207 = vadd.f32 %v203, %v205
    %v208 = vadd.f32 %v204, %v206
    %v209 = vld [vmem:[%s3] sm:$0x1]
    %v210 = vld [vmem:[%s3 + $0x1] sm:$0x1]
    %v211 = vmul.f32 %v207, %v209
    %v212 = vmul.f32 %v208, %v210
    %213 = vst [vmem:[#allocation2] sm:$0x1] %v211
    %214 = vst [vmem:[#allocation2 + $0x1] sm:$0x1] %v212
    // Predicated region
    $region18: #{srvfc_forward.1} parent=1 // pred_check
      _
    $region19: #{srvfc_forward.1} parent=1 // pred_check_branch
      %216 = sbr.rel (0) target = $region21
    $region20: #{srvfc_forward.1} parent=1 // pred_region
      %s218 = ssub.s32 32, 32
      %219 = vsyncadd [#allocation3], %s218
      %s220 = sshll.u32 [#allocation2], 4
      %s221 = int_to_ptr.vmem [resolvable:$true] %s220
      %226 = dma.vmem_to_hbm [thread:$0]  %s221, 32, %s4, [#allocation3], 16, 16, 1
    $region21: #{srvfc_forward.1} parent=1 // pred_fallthru
      _
    // Predicated region
    $region22: #{srvfc_forward.1} parent=1 // pred_check
      _
    $region23: #{srvfc_forward.1} parent=1 // pred_check_branch
      %228 = sbr.rel (0) target = $region25
    $region24: #{srvfc_forward.1} parent=1 // pred_region
      %229 = dma.done [#allocation3], 32
    $region25: #{srvfc_forward.1} parent=1 // pred_fallthru
      _
    %230 = vsyncpa [#allocation3], 1

</llo_original>
